<compile_context>
chip_gen: v6e
topology: v6e:2x2x1
jax: 0.10.0
libtpu: 0.0.40
codegen_flags: <defaults>
</compile_context>

<pallas_src>
import functools

import jax
import jax.numpy as jnp
import numpy as np
from jax.experimental import pallas as pl
from jax.experimental.pallas import tpu as pltpu


# ----------------------------------------------------------------------------
# helpers
# ----------------------------------------------------------------------------
def _round_up(x, m):
    return ((x + m - 1) // m) * m


def _pad2d(a, rows, cols):
    r, c = a.shape
    if r == rows and c == cols:
        return a
    return jnp.zeros((rows, cols), a.dtype).at[:r, :c].set(a)


def _pick_tile(dim, max_tile, align=128, min_steps=2):
    """Largest tile <= max_tile (multiple of `align`) that still leaves at
    least `min_steps` grid steps along this axis when possible (v7x has 2
    TensorCores sharded over 'parallel' grid axes)."""
    d_al = _round_up(dim, align)
    t = max(align, (d_al // min_steps) // align * align)
    return min(max_tile, t, d_al)


# ----------------------------------------------------------------------------
# Encoder kernels
# ----------------------------------------------------------------------------
def _rowtile_mm_kernel(a_ref, b_ref, o_ref):
    # (tm, K) @ (K, Dout): B is small and fully resident; rows of A pipelined.
    o_ref[...] = jnp.dot(a_ref[...], b_ref[...],
                         preferred_element_type=jnp.float32).astype(o_ref.dtype)


def _rowtile_matmul(a, b, *, max_tm=512, out_dtype=jnp.float32):
    m, k = a.shape
    _, nout = b.shape
    tm = _pick_tile(m, max_tm)
    m_pad = _round_up(m, tm)
    a_p = _pad2d(a, m_pad, k)
    out = pl.pallas_call(
        _rowtile_mm_kernel,
        out_shape=jax.ShapeDtypeStruct((m_pad, nout), out_dtype),
        grid=(m_pad // tm,),
        in_specs=[
            pl.BlockSpec((tm, k), lambda i: (i, 0)),
            pl.BlockSpec((k, nout), lambda i: (0, 0)),
        ],
        out_specs=pl.BlockSpec((tm, nout), lambda i: (i, 0)),
        compiler_params=pltpu.CompilerParams(
            dimension_semantics=("parallel",)),
    )(a_p, b)
    return out[:m]


def _ktile_mm_kernel(a_ref, b_ref, o_ref, *, tk):
    # Output block (index_map (i, 0)) is resident across the k axis, so we
    # accumulate straight into it — no f32 scratch / final copy needed.
    kk = pl.program_id(1)

    @pl.when(kk == 0)
    def _():
        o_ref[...] = jnp.zeros_like(o_ref)

    k0 = pl.multiple_of(kk * tk, 128)
    o_ref[...] += jnp.dot(a_ref[...], b_ref[pl.ds(k0, tk), :],
                          preferred_element_type=jnp.float32)


def _ktile_matmul(a, b, *, max_tm=512, max_tk=512):
    """(M, K) @ (K, Dout) with Dout small.  Rows of A are 'parallel', K is the
    'arbitrary' reduction.  B (only K x Dout) is kept fully resident in VMEM
    and sliced in-kernel, so it is not re-streamed for every row tile."""
    m, k = a.shape
    _, nout = b.shape
    tm = _pick_tile(m, max_tm)
    tk = min(max_tk, _round_up(k, 128))
    m_pad = _round_up(m, tm)
    k_pad = _round_up(k, tk)
    a_p = _pad2d(a, m_pad, k_pad)
    b_p = _pad2d(b, k_pad, nout)
    kernel = functools.partial(_ktile_mm_kernel, tk=tk)
    out = pl.pallas_call(
        kernel,
        out_shape=jax.ShapeDtypeStruct((m_pad, nout), jnp.float32),
        grid=(m_pad // tm, k_pad // tk),
        in_specs=[
            pl.BlockSpec((tm, tk), lambda i, kk: (i, kk)),
            pl.BlockSpec((k_pad, nout), lambda i, kk: (0, 0)),  # B resident
        ],
        out_specs=pl.BlockSpec((tm, nout), lambda i, kk: (i, 0)),
        compiler_params=pltpu.CompilerParams(
            dimension_semantics=("parallel", "arbitrary")),
    )(a_p, b_p)
    return out[:m]


def encode_pallas(a_hat, x, w, *, compute_dtype=jnp.bfloat16):
    """Z = A_hat @ X @ W, ordered so the cheap contraction happens first.
    Operands are stored/read in `compute_dtype` (bf16 halves the dominant
    A_hat HBM stream); accumulation is always f32 and Z is returned in f32."""
    f = x.shape[1]
    d = w.shape[1]
    a_c = a_hat.astype(compute_dtype)
    x_c = x.astype(compute_dtype)
    w_c = w.astype(compute_dtype)
    if d <= f:
        h = _rowtile_matmul(x_c, w_c, out_dtype=compute_dtype)   # (N, D)
        z = _ktile_matmul(a_c, h)                                # (N, D) f32
    else:
        ah = _ktile_matmul(a_c, x_c)                             # (N, F) f32
        z = _rowtile_matmul(ah.astype(compute_dtype), w_c,
                            out_dtype=jnp.float32)
    return z


# ----------------------------------------------------------------------------
# Dense decoder:  adj = sigmoid(Z @ Z^T), 2-D tiled.
# ----------------------------------------------------------------------------
def _dec_all_kernel(zr_ref, zc_ref, out_ref, *, apply_sigmoid):
    # contract the last (feature) dims directly; no transpose of Z needed.
    logits = jax.lax.dot_general(
        zr_ref[...], zc_ref[...],
        dimension_numbers=(((1,), (1,)), ((), ())),
        preferred_element_type=jnp.float32)
    res = jax.nn.sigmoid(logits) if apply_sigmoid else logits   # f32 math
    out_ref[...] = res.astype(out_ref.dtype)                    # cast at store


def decode_all_pallas(z, *, sigmoid=True, max_tile=512,
                      compute_dtype=jnp.bfloat16, out_dtype=None):
    n, d = z.shape
    t = _pick_tile(n, max_tile)                  # >=2 steps per axis if possible
    n_pad = _round_up(n, t)
    if out_dtype is None:
        out_dtype = compute_dtype                # bf16 adjacency halves writeback
    z_p = _pad2d(z, n_pad, d).astype(compute_dtype)
    kernel = functools.partial(_dec_all_kernel, apply_sigmoid=sigmoid)
    out = pl.pallas_call(
        kernel,
        out_shape=jax.ShapeDtypeStruct((n_pad, n_pad), out_dtype),
        grid=(n_pad // t, n_pad // t),
        in_specs=[
            pl.BlockSpec((t, d), lambda i, j: (i, 0)),   # row tile of Z
            pl.BlockSpec((t, d), lambda i, j: (j, 0)),   # col tile of Z
        ],
        out_specs=pl.BlockSpec((t, t), lambda i, j: (i, j)),
        compiler_params=pltpu.CompilerParams(
            dimension_semantics=("parallel", "parallel")),
    )(z_p, z_p)
    return out[:n, :n]


# ----------------------------------------------------------------------------
# Edge decoder:  (z[src] * z[dst]).sum(-1)  (+ optional sigmoid).
# edge_index is scalar-prefetched to SMEM; rows of Z are gathered with
# dynamic pl.ds loads into VMEM scratch (unrolled loop), reduced on the VPU,
# and stored as a lane-dense (1, te) row.
# ----------------------------------------------------------------------------
def _edge_kernel(ei_ref, z_ref, out_ref, zs_buf, zd_buf, *, te, apply_sigmoid):
    n_nodes = z_ref.shape[0]
    base = pl.program_id(0) * te

    def body(j, carry):
        # clip keeps dynamic row loads in-bounds (no HW bounds check on VMEM);
        # padded edges carry index 0 and are sliced off by the wrapper.
        src = jnp.clip(ei_ref[0, base + j], 0, n_nodes - 1)
        dst = jnp.clip(ei_ref[1, base + j], 0, n_nodes - 1)
        zs_buf[pl.ds(j, 1), :] = z_ref[pl.ds(src, 1), :]
        zd_buf[pl.ds(j, 1), :] = z_ref[pl.ds(dst, 1), :]
        return carry

    # Unrolled so the LLO scheduler can overlap scalar index math with the
    # vector row copies (a rolled gather loop is scalar/latency bound).
    jax.lax.fori_loop(0, te, body, 0, unroll=8)

    prod = zs_buf[...].astype(jnp.float32) * zd_buf[...].astype(jnp.float32)
    val = jnp.sum(prod, axis=1)                               # (te,)
    val = jax.nn.sigmoid(val) if apply_sigmoid else val       # f32 math
    out_ref[...] = val.reshape(1, te)                         # lane-dense store


def decode_edges_pallas(z, edge_index, *, sigmoid=True, te=256):
    n, d = z.shape
    e = edge_index.shape[1]
    te = max(128, min(te, _round_up(e, 128)))
    te = (te // 128) * 128                      # lane-dense output blocks
    e_pad = _round_up(e, te)
    n_blk = e_pad // te
    ei = jnp.zeros((2, e_pad), jnp.int32).at[:, :e].set(
        edge_index.astype(jnp.int32))
    zf = z.astype(jnp.float32)
    # TODO(synk): for very large graphs (v7x has only 64 MiB VMEM/TC) keep Z in
    # HBM (memory_space=pl.ANY) and DMA-gather row chunks with make_async_copy
    # (or at least pass Z in bf16) instead of pinning the whole (n, d) block.
    kernel = functools.partial(_edge_kernel, te=te, apply_sigmoid=sigmoid)
    out = pl.pallas_call(
        kernel,
        out_shape=jax.ShapeDtypeStruct((n_blk, te), jnp.float32),
        grid_spec=pltpu.PrefetchScalarGridSpec(
            num_scalar_prefetch=1,
            grid=(n_blk,),
            in_specs=[pl.BlockSpec((n, d), lambda eidx, ei_ref: (0, 0))],
            out_specs=pl.BlockSpec((1, te), lambda eidx, ei_ref: (eidx, 0)),
            scratch_shapes=[
                pltpu.VMEM((te, d), jnp.float32),
                pltpu.VMEM((te, d), jnp.float32),
            ],
        ),
        compiler_params=pltpu.CompilerParams(
            dimension_semantics=("parallel",)),
    )(ei, zf)
    return out.reshape(-1)[:e]


# ----------------------------------------------------------------------------
# GAE_S2 wrapper (JAX glue around the Pallas kernels)
# ----------------------------------------------------------------------------
class GAE_S2_Pallas:
    def __init__(self, w, compute_dtype=jnp.bfloat16):
        self.w = w                      # encoder weight (F, D)
        self.compute_dtype = compute_dtype

    def encode(self, a_hat, x):
        return encode_pallas(a_hat, x, self.w,
                             compute_dtype=self.compute_dtype)

    # forward == encode (alias, as in the PyTorch module)
    def __call__(self, a_hat, x):
        return self.encode(a_hat, x)

    def decode(self, z, edge_index, sigmoid=True):
        # pre-sigmoid logits come straight from the kernel when sigmoid=False
        return decode_edges_pallas(z, edge_index, sigmoid=sigmoid)

    def decode_all(self, z, sigmoid=True):
        return decode_all_pallas(z, sigmoid=sigmoid,
                                 compute_dtype=self.compute_dtype)


def build_normalized_adjacency(edge_index, n):
    """Dense GCN-normalized adjacency  D^-1/2 (A + A^T + I) D^-1/2 (JAX glue)."""
    a = jnp.zeros((n, n), jnp.float32)
    a = a.at[edge_index[0], edge_index[1]].set(1.0)
    a = jnp.maximum(a, a.T)
    a = a + jnp.eye(n, dtype=jnp.float32)
    deg = a.sum(axis=1)
    d_inv_sqrt = 1.0 / jnp.sqrt(deg)
    return a * d_inv_sqrt[:, None] * d_inv_sqrt[None, :]


if __name__ == "__main__":
    key = jax.random.PRNGKey(0)
    k_x, k_w, k_e = jax.random.split(key, 3)

    # nodes, in-features, latent dim, edges (exercises the tiled grids)
    N, F, D, E = 256, 64, 16, 512

    x = jax.random.normal(k_x, (N, F), dtype=jnp.float32)
    w = jax.random.normal(k_w, (F, D), dtype=jnp.float32) * 0.1
    edge_index = jax.random.randint(k_e, (2, E), 0, N, dtype=jnp.int32)

    a_hat = build_normalized_adjacency(edge_index, N)

    # ---- exact-parity path (f32 operands, f32 adjacency): tight check ----
    model32 = GAE_S2_Pallas(w, compute_dtype=jnp.float32)
    z32 = model32(a_hat, x)
    adj32 = model32.decode_all(z32)
    ep32 = model32.decode(z32, edge_index)
    el32 = model32.decode(z32, edge_index, sigmoid=False)

    # ---- performance-default path (bf16 operands, bf16 adjacency) ----
    model = GAE_S2_Pallas(w)           # compute_dtype=bfloat16
    z = model(a_hat, x)
    adj = model.decode_all(z)
    ep = model.decode(z, edge_index)
    el = model.decode(z, edge_index, sigmoid=False)

    jax.block_until_ready((z32, adj32, ep32, el32, z, adj, ep, el))

    # Reference (float64 numpy)
    a_np = np.asarray(a_hat, dtype=np.float64)
    x_np = np.asarray(x, dtype=np.float64)
    w_np = np.asarray(w, dtype=np.float64)
    ei_np = np.asarray(edge_index)

    z_ref = a_np @ (x_np @ w_np)
    adj_ref = 1.0 / (1.0 + np.exp(-(z_ref @ z_ref.T)))
    logit_ref = np.sum(z_ref[ei_np[0]] * z_ref[ei_np[1]], axis=1)
    edge_ref = 1.0 / (1.0 + np.exp(-logit_ref))

    # f32 path: tight parity with the float64 reference
    assert np.allclose(np.asarray(z32), z_ref, rtol=1e-4, atol=1e-4)
    assert np.allclose(np.asarray(adj32), adj_ref, rtol=1e-4, atol=1e-4)
    assert np.allclose(np.asarray(ep32), edge_ref, rtol=1e-4, atol=1e-4)
    assert np.allclose(np.asarray(el32), logit_ref, rtol=1e-4, atol=1e-4)

    # bf16 path: encoder checked at bf16-level tolerance against the analytic
    # reference; decoders checked against a float64 decode of this model's own Z.
    zb = np.asarray(z, dtype=np.float64)
    adj_ref_b = 1.0 / (1.0 + np.exp(-(zb @ zb.T)))
    logit_ref_b = np.sum(zb[ei_np[0]] * zb[ei_np[1]], axis=1)
    edge_ref_b = 1.0 / (1.0 + np.exp(-logit_ref_b))

    assert np.allclose(np.asarray(z), z_ref, rtol=5e-2, atol=5e-2)
    assert np.allclose(np.asarray(adj, dtype=np.float64), adj_ref_b,
                       rtol=5e-2, atol=5e-2)
    assert np.allclose(np.asarray(ep), edge_ref_b, rtol=1e-4, atol=1e-4)
    assert np.allclose(np.asarray(el), logit_ref_b, rtol=1e-4, atol=1e-4)

    print("KERNEL_OK")
</pallas_src>

<mosaic_0001>
module attributes {stable_mosaic.version = 11 : i64} {
  func.func @_rowtile_mm_kernel(%arg0: i32, %arg1: memref<128x64xf32, #tpu.memory_space<vmem>>, %arg2: memref<64x16xf32, #tpu.memory_space<vmem>>, %arg3: memref<128x16xf32, #tpu.memory_space<vmem>>) attributes {dimension_semantics = [#tpu.dimension_semantics<parallel>], iteration_bounds = array<i64: 2>, scalar_prefetch = 0 : i64, scratch_operands = 0 : i64, tpu.core_type = #tpu.core_type<tc>, window_params = [{transform_indices = @transform_0, window_bounds = array<i64: 128, 64>}, {pipeline_mode = #tpu.pipeline_mode<synchronous>, transform_indices = @transform_1, window_bounds = array<i64: 64, 16>}, {transform_indices = @transform_2, window_bounds = array<i64: 128, 16>}]} {
    %c0 = arith.constant 0 : index
    %c0_0 = arith.constant 0 : index
    %0 = vector.load %arg1[%c0, %c0_0] : memref<128x64xf32, #tpu.memory_space<vmem>>, vector<128x64xf32>
    %c0_1 = arith.constant 0 : index
    %c0_2 = arith.constant 0 : index
    %1 = vector.load %arg2[%c0_1, %c0_2] : memref<64x16xf32, #tpu.memory_space<vmem>>, vector<64x16xf32>
    %cst = arith.constant dense<0.000000e+00> : vector<128x16xf32>
    %2 = tpu.matmul %0, %1, %cst {dimension_numbers = #tpu.dot_dimension_numbers<[1], [0], [0], [1], [0, 0, 1, 1], [], []>} : vector<128x64xf32>, vector<64x16xf32>, vector<128x16xf32> -> vector<128x16xf32>
    %c0_3 = arith.constant 0 : index
    %c0_4 = arith.constant 0 : index
    %3 = vector.load %arg3[%c0_3, %c0_4] : memref<128x16xf32, #tpu.memory_space<vmem>>, vector<128x16xf32>
    tpu.vector_store %arg3[%c0_3, %c0_4], %2 {strides = array<i32>} : memref<128x16xf32, #tpu.memory_space<vmem>>, vector<128x16xf32>,
    return
  }
  func.func @transform_0(%arg0: i32) -> (i32, i32) {
    %c0_i32 = arith.constant 0 : i32
    %c0_i32_0 = arith.constant 0 : i32
    return %arg0, %c0_i32 : i32, i32
  }
  func.func @transform_1(%arg0: i32) -> (i32, i32) {
    %c0_i32 = arith.constant 0 : i32
    %c0_i32_0 = arith.constant 0 : i32
    %c0_i32_1 = arith.constant 0 : i32
    return %c0_i32, %c0_i32_0 : i32, i32
  }
  func.func @transform_2(%arg0: i32) -> (i32, i32) {
    %c0_i32 = arith.constant 0 : i32
    %c0_i32_0 = arith.constant 0 : i32
    return %arg0, %c0_i32 : i32, i32
  }
}

</mosaic_0001>

<llo_original>
// kernel: tpu_custom_call.1
$region0: #{tpu_custom_call.1}
  #allocation0 [shape = 'u32[]', space=smem, size = 0x4, offset = 0x4, fixed_abs, tag = 'smem constant byte address 0x4 - core index']
  #allocation1 [shape = 'u32[144,128]{1,0:T(1,128)}', space=vmem, size = 0x12000, scoped, tag = 'internal scratch']
  %s0 = inlined_call_operand.vmem [shape: f32[256,64], index: 0, kind: input, shape index: {}]
  %s1 = inlined_call_operand.vmem [shape: f32[64,16], index: 1, kind: input, shape index: {}]
  %s2 = inlined_call_operand.vmem [shape: f32[256,16], index: 2, kind: output, shape index: {}]
  %s3 = sld [smem:[#allocation0]]
  $region41: #{tpu_custom_call.1} parent=0
    _
  %s5 = ssub.s32 1, %s3
  %s6 = scalar_select 0, %s5, %s3
  loop: start=0, step=1, limit=4
  $region2: #{tpu_custom_call.1} parent=0 // loop_pre_header
    _
  $region3: #{tpu_custom_call.1} parent=0 // loop_header
    %s8 = sphi 0, %s12
    %p9 = scmp.ge.s32.totalorder %s8, 4
    %s18 = sphi 0, %s20
    %s21 = sphi 0, %s18
    %s22 = sphi 0, %s21
    %s38 = sphi 0, %s22
    %s42 = sphi 0, %s42
    %s44 = sphi 0, %s42
    %s45 = sphi 0, %s44
    %s59 = sphi 0, %s45
    %s65 = sphi 0, %s67
    %s68 = sphi 0, %s65
    %s69 = sphi 0, %s68
    %s85 = sphi 0, %s69
  $region4: #{tpu_custom_call.1} parent=0 // loop_header_branch
    %11 = sbr.rel (%p9) target = $region8
  $region5: #{tpu_custom_call.1} parent=0 // loop_body
    %s13 = ssub.s32 %s8, 1
    %s14 = ssub.s32 %s8, 2
    %s15 = sadd.s32 %s8, 1
    %s16 = ssub.s32 %s8, %s15
    %p17 = scmp.eq.s32.totalorder %s16, 0
    %s19 = sadd.s32 %s18, 1
    %s20 = scalar_select %p17, %s18, %s19
    %p23 = pneg %p17
    %p24 = scmp.eq.s32.totalorder %s8, 1
    %p25 = por %p23, %p24
    %p26 = scmp.ne.s32.totalorder %s18, %s21
    %p27 = scmp.eq.s32.totalorder %s8, 0
    %p28 = por %p26, %p27
    %p29 = scmp.ne.s32.totalorder %s18, %s21
    %p30 = scmp.eq.s32.totalorder %s13, 1
    %p31 = por %p29, %p30
    %p32 = scmp.ne.s32.totalorder %s21, %s22
    %p33 = scmp.eq.s32.totalorder %s13, 0
    %p34 = por %p32, %p33
    %p35 = scmp.ne.s32.totalorder %s21, %s22
    %p36 = scmp.eq.s32.totalorder %s14, 1
    %p37 = por %p35, %p36
    %p39 = scmp.ne.s32.totalorder %s22, %s38
    %p40 = scmp.eq.s32.totalorder %s14, 0
    %p41 = por %p39, %p40
    %s43 = sadd.s32 %s42, 1
    %p46 = scmp.eq.s32.totalorder %s8, 1
    %p47 = scmp.ne.s32.totalorder %s42, %s44
    %p48 = scmp.eq.s32.totalorder %s8, 0
    %p49 = por %p47, %p48
    %p50 = scmp.ne.s32.totalorder %s42, %s44
    %p51 = scmp.eq.s32.totalorder %s13, 1
    %p52 = por %p50, %p51
    %p53 = scmp.ne.s32.totalorder %s44, %s45
    %p54 = scmp.eq.s32.totalorder %s13, 0
    %p55 = por %p53, %p54
    %p56 = scmp.ne.s32.totalorder %s44, %s45
    %p57 = scmp.eq.s32.totalorder %s14, 1
    %p58 = por %p56, %p57
    %p60 = scmp.ne.s32.totalorder %s45, %s59
    %p61 = scmp.eq.s32.totalorder %s14, 0
    %p62 = por %p60, %p61
    %s63 = ssub.s32 %s8, %s15
    %p64 = scmp.eq.s32.totalorder %s63, 0
    %s66 = sadd.s32 %s65, 1
    %s67 = scalar_select %p64, %s65, %s66
    %p70 = pneg %p64
    %p71 = scmp.eq.s32.totalorder %s8, 1
    %p72 = por %p70, %p71
    %p73 = scmp.ne.s32.totalorder %s65, %s68
    %p74 = scmp.eq.s32.totalorder %s8, 0
    %p75 = por %p73, %p74
    %p76 = scmp.ne.s32.totalorder %s65, %s68
    %p77 = scmp.eq.s32.totalorder %s13, 1
    %p78 = por %p76, %p77
    %p79 = scmp.ne.s32.totalorder %s68, %s69
    %p80 = scmp.eq.s32.totalorder %s13, 0
    %p81 = por %p79, %p80
    %p82 = scmp.ne.s32.totalorder %s68, %s69
    %p83 = scmp.eq.s32.totalorder %s14, 1
    %p84 = por %p82, %p83
    %p86 = scmp.ne.s32.totalorder %s69, %s85
    %p87 = scmp.eq.s32.totalorder %s14, 0
    %p88 = por %p86, %p87
    %p89 = scmp.le.s32.totalorder 1, %s8
    %p90 = scmp.lt.s32.totalorder %s8, 3
    %p91 = pnand %p89, %p90
    %p92 = pneg %p91
    // Predicated region
    $region9: #{tpu_custom_call.1} parent=5 // pred_check
      _
    $region10: #{tpu_custom_call.1} parent=5 // pred_check_branch
      %94 = sbr.rel (%p91) target = $region12
    $region11: #{tpu_custom_call.1} parent=5 // pred_region
      %s95 = ssub.s32 %s8, 1
      // Predicated region
      $region13: #{tpu_custom_call.1} parent=11 // pred_check
        %p96 = pneg %p55
      $region14: #{tpu_custom_call.1} parent=11 // pred_check_branch
        %98 = sbr.rel (%p96) target = $region16
      $region15: #{tpu_custom_call.1} parent=11 // pred_region
        _
      $region16: #{tpu_custom_call.1} parent=11 // pred_fallthru
        _
    $region12: #{tpu_custom_call.1} parent=5 // pred_fallthru
      _
    %p99 = scmp.lt.s32.totalorder %s8, 2
    // Predicated region
    $region17: #{tpu_custom_call.1} parent=5 // pred_check
      %p100 = pneg %p99
    $region18: #{tpu_custom_call.1} parent=5 // pred_check_branch
      %102 = sbr.rel (%p100) target = $region20
    $region19: #{tpu_custom_call.1} parent=5 // pred_region
      // Predicated region
      $region21: #{tpu_custom_call.1} parent=19 // pred_check
        %p103 = pneg %p28
      $region22: #{tpu_custom_call.1} parent=19 // pred_check_branch
        %105 = sbr.rel (%p103) target = $region24
      $region23: #{tpu_custom_call.1} parent=19 // pred_region
        %s106 = smul.u32 16, %s8
        %p107 = scmp.lt.s32.totalorder %s106, 31
        %s108 = scalar_select %p107, %s106, 31
        %s109 = smul.addr %s108, 8
        %s110 = scalar_lea.vmem %s0, %s109
        %s111 = smul.u32 16, %s8
      $region24: #{tpu_custom_call.1} parent=19 // pred_fallthru
        _
    $region20: #{tpu_custom_call.1} parent=5 // pred_fallthru
      _
    %p112 = scmp.le.s32.totalorder 1, %s8
    %p113 = scmp.lt.s32.totalorder %s8, 3
    %p114 = pnand %p112, %p113
    %p115 = pneg %p114
    // Predicated region
    $region25: #{tpu_custom_call.1} parent=5 // pred_check
      _
    $region26: #{tpu_custom_call.1} parent=5 // pred_check_branch
      %117 = sbr.rel (%p114) target = $region28
    $region27: #{tpu_custom_call.1} parent=5 // pred_region
      %s118 = ssub.s32 %s8, 1
      %s119 = smul.u32 16, %s13
      %p120 = scmp.lt.s32.totalorder %s119, 31
      %s121 = scalar_select %p120, %s119, 31
      %s122 = smul.addr %s121, 8
      %s123 = scalar_lea.vmem %s0, %s122
      %p124 = pneg %p34
      %p125 = pneg %p31
      %p126 = pneg %p55
      %p127 = pneg %p52
      %p128 = pneg %p81
      %p129 = pneg %p78
      %s130 = smul.u32 16, %s13
      %p131 = scmp.lt.s32.totalorder %s130, 31
      %s132 = scalar_select %p131, %s130, 31
      %s133 = smul.addr %s132, 8
      %s134 = scalar_lea.vmem %s2, %s133
      %s135 = smul.u32 16, %s13
      %p136 = scmp.lt.s32.totalorder %s135, 31
      %s137 = scalar_select %p136, %s135, 31
      %s138 = smul.addr %s137, 8
      %s139 = scalar_lea.vmem %s0, %s138
      %s140 = smul.u32 16, %s13
      %s141 = smul.u32 16, %s13
      %p142 = scmp.lt.s32.totalorder %s141, 31
      %s143 = scalar_select %p142, %s141, 31
      %s144 = smul.addr %s143, 8
      %s145 = scalar_lea.vmem %s2, %s144
      %s146 = smul.u32 16, %s13
      %v147 = vld [vmem:[%s139] sm:$0xff]
      %v148 = vld [vmem:[%s139 + $0x8] sm:$0xff]
      %v149 = vld [vmem:[%s139 + $0x10] sm:$0xff]
      %v150 = vld [vmem:[%s139 + $0x18] sm:$0xff]
      %v151 = vld [vmem:[%s139 + $0x20] sm:$0xff]
      %v152 = vld [vmem:[%s139 + $0x28] sm:$0xff]
      %v153 = vld [vmem:[%s139 + $0x30] sm:$0xff]
      %v154 = vld [vmem:[%s139 + $0x38] sm:$0xff]
      %v155 = vld [vmem:[%s139 + $0x40] sm:$0xff]
      %v156 = vld [vmem:[%s139 + $0x48] sm:$0xff]
      %v157 = vld [vmem:[%s139 + $0x50] sm:$0xff]
      %v158 = vld [vmem:[%s139 + $0x58] sm:$0xff]
      %v159 = vld [vmem:[%s139 + $0x60] sm:$0xff]
      %v160 = vld [vmem:[%s139 + $0x68] sm:$0xff]
      %v161 = vld [vmem:[%s139 + $0x70] sm:$0xff]
      %v162 = vld [vmem:[%s139 + $0x78] sm:$0xff]
      %v163 = vld [vmem:[%s1] sm:$0xff]
      %v164 = vld [vmem:[%s1 + $0x8] sm:$0xff]
      %v165 = vld [vmem:[%s1 + $0x10] sm:$0xff]
      %v166 = vld [vmem:[%s1 + $0x18] sm:$0xff]
      %v167 = vld [vmem:[%s1 + $0x20] sm:$0xff]
      %v168 = vld [vmem:[%s1 + $0x28] sm:$0xff]
      %v169 = vld [vmem:[%s1 + $0x30] sm:$0xff]
      %v170 = vld [vmem:[%s1 + $0x38] sm:$0xff]
      %vm171 = vcmask 523264
      %v173 = vsel %vm171, %v147, 0
      %v176 = vsel %vm171, %v148, 0
      %v179 = vsel %vm171, %v149, 0
      %v182 = vsel %vm171, %v150, 0
      %v185 = vsel %vm171, %v151, 0
      %v188 = vsel %vm171, %v152, 0
      %v191 = vsel %vm171, %v153, 0
      %v194 = vsel %vm171, %v154, 0
      %v197 = vsel %vm171, %v155, 0
      %v200 = vsel %vm171, %v156, 0
      %v203 = vsel %vm171, %v157, 0
      %v206 = vsel %vm171, %v158, 0
      %v209 = vsel %vm171, %v159, 0
      %v212 = vsel %vm171, %v160, 0
      %v215 = vsel %vm171, %v161, 0
      %v218 = vsel %vm171, %v162, 0
      %220 = vmatprep.subr.mxu0 0.0
      %221 = vmatpush1.msra.mxu0 0.0
      %222 = vmatprep.subr.mxu0 0.0
      %223 = vmatpush1.msra.mxu0 0.0
      %224 = vmatprep.subr.mxu0 0.0
      %225 = vmatpush1.msra.mxu0 0.0
      %226 = vmatprep.subr.mxu0 0.0
      %227 = vmatpush1.msra.mxu0 0.0
      %228 = vmatprep.subr.mxu0 0.0
      %229 = vmatpush1.msra.mxu0 0.0
      %230 = vmatprep.subr.mxu0 0.0
      %231 = vmatpush1.msra.mxu0 0.0
      %232 = vmatprep.subr.mxu0 0.0
      %233 = vmatpush1.msra.mxu0 0.0
      %234 = vmatprep.subr.mxu0 0.0
      %235 = vmatpush1.msra.mxu0 0.0
      %236 = vmatprep.subr.mxu0 0.0
      %237 = vmatpush1.msra.mxu0 %v170
      %238 = vmatprep.subr.mxu0 0.0
      %239 = vmatpush1.msra.mxu0 %v169
      %240 = vmatprep.subr.mxu0 0.0
      %241 = vmatpush1.msra.mxu0 %v168
      %242 = vmatprep.subr.mxu0 0.0
      %243 = vmatpush1.msra.mxu0 %v167
      %244 = vmatprep.subr.mxu0 0.0
      %245 = vmatpush1.msra.mxu0 %v166
      %246 = vmatprep.subr.mxu0 0.0
      %247 = vmatpush1.msra.mxu0 %v165
      %248 = vmatprep.subr.mxu0 0.0
      %249 = vmatpush1.msra.mxu0 %v164
      %250 = vmatprep.subr.mxu0 0.0
      %251 = vmatpush1.msra.mxu0 %v163
      %252 = vmatprep.subr.mxu0 0.0
      %253 = vmatpush2.msra.mxu0 0.0
      %254 = vmatprep.subr.mxu0 0.0
      %255 = vmatpush2.msra.mxu0 0.0
      %256 = vmatprep.subr.mxu0 0.0
      %257 = vmatpush2.msra.mxu0 0.0
      %258 = vmatprep.subr.mxu0 0.0
      %259 = vmatpush2.msra.mxu0 0.0
      %260 = vmatprep.subr.mxu0 0.0
      %261 = vmatpush2.msra.mxu0 0.0
      %262 = vmatprep.subr.mxu0 0.0
      %263 = vmatpush2.msra.mxu0 0.0
      %264 = vmatprep.subr.mxu0 0.0
      %265 = vmatpush2.msra.mxu0 0.0
      %266 = vmatprep.subr.mxu0 0.0
      %267 = vmatpush2.msra.mxu0 0.0
      %268 = vmatprep.subr.mxu0 0.0
      %269 = vmatpush2.msra.mxu0 0.0
      %270 = vmatprep.subr.mxu0 0.0
      %271 = vmatpush2.msra.mxu0 0.0
      %272 = vmatprep.subr.mxu0 0.0
      %273 = vmatpush2.msra.mxu0 0.0
      %274 = vmatprep.subr.mxu0 0.0
      %275 = vmatpush2.msra.mxu0 0.0
      %276 = vmatprep.subr.mxu0 0.0
      %277 = vmatpush2.msra.mxu0 0.0
      %278 = vmatprep.subr.mxu0 0.0
      %279 = vmatpush2.msra.mxu0 0.0
      %280 = vmatprep.subr.mxu0 0.0
      %281 = vmatpush2.msra.mxu0 0.0
      %282 = vmatprep.subr.mxu0 0.0
      %283 = vmatpush2.msra.mxu0 0.0
      %284 = vmatprep.mubr.f32.mxu0 0.0
      %285 = vmatmul.mubr.f32.gmra.mxu0 %v173
      %v286 = vpop.f32.mrf.mxu0
      %v287 = vadd.f32 0.0, %v286
      %v288 = vpop.f32.mrf.mxu0
      %289 = vmatprep.mubr.f32.mxu0 0.0
      %290 = vmatmul.mubr.f32.gmra.mxu0 %v176
      %v291 = vpop.f32.mrf.mxu0
      %v292 = vadd.f32 0.0, %v291
      %v293 = vpop.f32.mrf.mxu0
      %294 = vmatprep.mubr.f32.mxu0 0.0
      %295 = vmatmul.mubr.f32.gmra.mxu0 %v179
      %v296 = vpop.f32.mrf.mxu0
      %v297 = vadd.f32 0.0, %v296
      %v298 = vpop.f32.mrf.mxu0
      %299 = vmatprep.mubr.f32.mxu0 0.0
      %300 = vmatmul.mubr.f32.gmra.mxu0 %v182
      %v301 = vpop.f32.mrf.mxu0
      %v302 = vadd.f32 0.0, %v301
      %v303 = vpop.f32.mrf.mxu0
      %304 = vmatprep.mubr.f32.mxu0 0.0
      %305 = vmatmul.mubr.f32.gmra.mxu0 %v185
      %v306 = vpop.f32.mrf.mxu0
      %v307 = vadd.f32 0.0, %v306
      %v308 = vpop.f32.mrf.mxu0
      %309 = vmatprep.mubr.f32.mxu0 0.0
      %310 = vmatmul.mubr.f32.gmra.mxu0 %v188
      %v311 = vpop.f32.mrf.mxu0
      %v312 = vadd.f32 0.0, %v311
      %v313 = vpop.f32.mrf.mxu0
      %314 = vmatprep.mubr.f32.mxu0 0.0
      %315 = vmatmul.mubr.f32.gmra.mxu0 %v191
      %v316 = vpop.f32.mrf.mxu0
      %v317 = vadd.f32 0.0, %v316
      %v318 = vpop.f32.mrf.mxu0
      %319 = vmatprep.mubr.f32.mxu0 0.0
      %320 = vmatmul.mubr.f32.gmra.mxu0 %v194
      %v321 = vpop.f32.mrf.mxu0
      %v322 = vadd.f32 0.0, %v321
      %v323 = vpop.f32.mrf.mxu0
      %324 = vmatprep.mubr.f32.mxu0 0.0
      %325 = vmatmul.mubr.f32.gmra.mxu0 %v197
      %v326 = vpop.f32.mrf.mxu0
      %v327 = vadd.f32 0.0, %v326
      %v328 = vpop.f32.mrf.mxu0
      %329 = vmatprep.mubr.f32.mxu0 0.0
      %330 = vmatmul.mubr.f32.gmra.mxu0 %v200
      %v331 = vpop.f32.mrf.mxu0
      %v332 = vadd.f32 0.0, %v331
      %v333 = vpop.f32.mrf.mxu0
      %334 = vmatprep.mubr.f32.mxu0 0.0
      %335 = vmatmul.mubr.f32.gmra.mxu0 %v203
      %v336 = vpop.f32.mrf.mxu0
      %v337 = vadd.f32 0.0, %v336
      %v338 = vpop.f32.mrf.mxu0
      %339 = vmatprep.mubr.f32.mxu0 0.0
      %340 = vmatmul.mubr.f32.gmra.mxu0 %v206
      %v341 = vpop.f32.mrf.mxu0
      %v342 = vadd.f32 0.0, %v341
      %v343 = vpop.f32.mrf.mxu0
      %344 = vmatprep.mubr.f32.mxu0 0.0
      %345 = vmatmul.mubr.f32.gmra.mxu0 %v209
      %v346 = vpop.f32.mrf.mxu0
      %v347 = vadd.f32 0.0, %v346
      %v348 = vpop.f32.mrf.mxu0
      %349 = vmatprep.mubr.f32.mxu0 0.0
      %350 = vmatmul.mubr.f32.gmra.mxu0 %v212
      %v351 = vpop.f32.mrf.mxu0
      %v352 = vadd.f32 0.0, %v351
      %v353 = vpop.f32.mrf.mxu0
      %354 = vmatprep.mubr.f32.mxu0 0.0
      %355 = vmatmul.mubr.f32.gmra.mxu0 %v215
      %v356 = vpop.f32.mrf.mxu0
      %v357 = vadd.f32 0.0, %v356
      %v358 = vpop.f32.mrf.mxu0
      %359 = vmatprep.mubr.f32.mxu0 0.0
      %360 = vmatmul.mubr.f32.gmra.mxu0 %v218
      %v361 = vpop.f32.mrf.mxu0
      %v362 = vadd.f32 0.0, %v361
      %v363 = vpop.f32.mrf.mxu0
      %364 = vdwg.mxu0
      %vm365 = vcmask 130048
      %366 = vst.msk [vmem:[%s145] sm:$0xff] %vm365, %v287
      %367 = vst.msk [vmem:[%s145 + $0x8] sm:$0xff] %vm365, %v292
      %368 = vst.msk [vmem:[%s145 + $0x10] sm:$0xff] %vm365, %v297
      %369 = vst.msk [vmem:[%s145 + $0x18] sm:$0xff] %vm365, %v302
      %370 = vst.msk [vmem:[%s145 + $0x20] sm:$0xff] %vm365, %v307
      %371 = vst.msk [vmem:[%s145 + $0x28] sm:$0xff] %vm365, %v312
      %372 = vst.msk [vmem:[%s145 + $0x30] sm:$0xff] %vm365, %v317
      %373 = vst.msk [vmem:[%s145 + $0x38] sm:$0xff] %vm365, %v322
      %374 = vst.msk [vmem:[%s145 + $0x40] sm:$0xff] %vm365, %v327
      %375 = vst.msk [vmem:[%s145 + $0x48] sm:$0xff] %vm365, %v332
      %376 = vst.msk [vmem:[%s145 + $0x50] sm:$0xff] %vm365, %v337
      %377 = vst.msk [vmem:[%s145 + $0x58] sm:$0xff] %vm365, %v342
      %378 = vst.msk [vmem:[%s145 + $0x60] sm:$0xff] %vm365, %v347
      %379 = vst.msk [vmem:[%s145 + $0x68] sm:$0xff] %vm365, %v352
      %380 = vst.msk [vmem:[%s145 + $0x70] sm:$0xff] %vm365, %v357
      %381 = vst.msk [vmem:[%s145 + $0x78] sm:$0xff] %vm365, %v362
      %s382 = smul.u32 16, %s13
      %p383 = scmp.lt.s32.totalorder %s382, 31
      %s384 = scalar_select %p383, %s382, 31
      %s385 = smul.addr %s384, 8
      %s386 = scalar_lea.vmem %s2, %s385
      // Predicated region
      $region29: #{tpu_custom_call.1} parent=27 // pred_check
        %p387 = pneg %p78
      $region30: #{tpu_custom_call.1} parent=27 // pred_check_branch
        %389 = sbr.rel (%p387) target = $region32
      $region31: #{tpu_custom_call.1} parent=27 // pred_region
        %s390 = smul.u32 16, %s13
      $region32: #{tpu_custom_call.1} parent=27 // pred_fallthru
        _
    $region28: #{tpu_custom_call.1} parent=5 // pred_fallthru
      _
    %p391 = scmp.le.s32.totalorder 2, %s8
    // Predicated region
    $region33: #{tpu_custom_call.1} parent=5 // pred_check
      %p392 = pneg %p391
    $region34: #{tpu_custom_call.1} parent=5 // pred_check_branch
      %394 = sbr.rel (%p392) target = $region36
    $region35: #{tpu_custom_call.1} parent=5 // pred_region
      %s395 = ssub.s32 %s8, 2
      // Predicated region
      $region37: #{tpu_custom_call.1} parent=35 // pred_check
        %p396 = pneg %p84
      $region38: #{tpu_custom_call.1} parent=35 // pred_check_branch
        %398 = sbr.rel (%p396) target = $region40
      $region39: #{tpu_custom_call.1} parent=35 // pred_region
        %s399 = smul.u32 16, %s14
        %p400 = scmp.lt.s32.totalorder %s399, 31
        %s401 = scalar_select %p400, %s399, 31
        %s402 = smul.addr %s401, 8
        %s403 = scalar_lea.vmem %s2, %s402
      $region40: #{tpu_custom_call.1} parent=35 // pred_fallthru
        _
    $region36: #{tpu_custom_call.1} parent=5 // pred_fallthru
      _
  $region6: #{tpu_custom_call.1} parent=0 // loop_footer
    %s12 = sadd.s32 1, %s8
  $region7: #{tpu_custom_call.1} parent=0 // loop_footer_branch
    %7 = sbr.rel target = $region3
  $region8: #{tpu_custom_call.1} parent=0 // loop_exit
    _

</llo_original>
